<compile_context>
chip_gen: v7x
topology: tpu7x:2x2x1
jax: 0.10.0
libtpu: 0.0.40
codegen_flags: <defaults>
</compile_context>

<pallas_src>
import functools

import jax
import jax.numpy as jnp
from jax.experimental import pallas as pl
from jax.experimental.pallas import tpu as pltpu

_LANES = 128
# Padding logit: sigmoid -> 0, (1 - pt) -> 0, ce -> 0  => exactly zero loss.
_PAD_LOGIT = -1.0e4


def _cdiv(a, b):
    return -(-a // b)


def _round_up(x, m):
    return ((x + m - 1) // m) * m


def _focal_kernel(logits_ref, label_ref, out_ref, *, alpha, gamma, rb):
    j = pl.program_id(1)

    @pl.when(j == 0)
    def _():
        out_ref[...] = jnp.zeros_like(out_ref)

    x = logits_ref[...].astype(jnp.float32)            # logits.float()
    y = label_ref[...].astype(jnp.float32)             # label.float()
    is_pos = y == 1.0                                  # label == 1 mask

    # Shared transcendental: e = exp(-|x|) feeds both sigmoid and the
    # numerically-stable BCE-with-logits term.
    e = jnp.exp(-jnp.abs(x))
    inv_1pe = pl.reciprocal(1.0 + e, approx=True)
    sig = jnp.where(x >= 0.0, inv_1pe, e * inv_1pe)    # sigmoid(x)

    pt = jnp.where(is_pos, sig, 1.0 - sig)
    alpha_t = jnp.where(is_pos, jnp.float32(alpha), jnp.float32(1.0 - alpha))

    # BCEWithLogitsLoss(reduction='none'): max(x,0) - x*y + log1p(exp(-|x|))
    ce = jnp.maximum(x, 0.0) - x * y + jnp.log1p(e)

    one_m_pt = 1.0 - pt
    g = float(gamma)
    if g == int(g) and 0 <= int(g) <= 8:
        gi = int(g)
        if gi == 0:
            mod = jnp.ones_like(one_m_pt)
        else:
            mod = one_m_pt
            for _ in range(gi - 1):
                mod = mod * one_m_pt
    else:
        mod = jnp.power(one_m_pt, jnp.float32(g))

    loss = alpha_t * mod * ce

    # Lane-wise accumulation onto an (8,128) vreg slab (pure VPU adds); the
    # single cross-lane/sublane reduce happens once, outside the kernel.
    out_ref[...] += loss.reshape(rb // 8, 8, _LANES).sum(axis=0)


def focal_loss_v1(logits, label, *, alpha=0.25, gamma=2, reduction="mean",
                  row_block=1024):
    """Pallas TPU implementation of FocalLossV1.forward (reduction='mean'/'sum')."""
    # TODO(synk): reduction='none' (unreduced elementwise output) is not lowered.
    assert reduction in ("mean", "sum")

    total = int(logits.size)
    rows_raw = _cdiv(total, _LANES)

    # Row block: multiple of 8 (f32 sublane tile); big enough to amortize the
    # per-grid-step overhead, small enough (<= 512 KiB/block) for the scoped
    # VMEM default on every TPU generation (v5e 16 MiB .. v7x 32 MiB).
    rb = _round_up(max(8, min(int(row_block), _round_up(rows_raw, 8))), 8)

    blocks = _cdiv(rows_raw, rb)
    num_par = 2 if blocks >= 2 else 1           # feed both v7x TensorCores
    blocks_per_par = _cdiv(blocks, num_par)
    padded_rows = num_par * blocks_per_par * rb
    padded_total = padded_rows * _LANES

    flat_logits = jnp.ravel(logits)
    flat_label = jnp.ravel(label)
    if padded_total > total:
        pad = padded_total - total
        flat_logits = jnp.pad(flat_logits, (0, pad), constant_values=_PAD_LOGIT)
        flat_label = jnp.pad(flat_label, (0, pad))
    logits2d = flat_logits.reshape(padded_rows, _LANES)
    label2d = flat_label.reshape(padded_rows, _LANES)

    kernel = functools.partial(_focal_kernel, alpha=float(alpha),
                               gamma=gamma, rb=rb)

    def in_map(p, j):
        return (p * blocks_per_par + j, 0)

    partial_sums = pl.pallas_call(
        kernel,
        out_shape=jax.ShapeDtypeStruct((num_par, 8, _LANES), jnp.float32),
        grid_spec=pltpu.PrefetchScalarGridSpec(
            num_scalar_prefetch=0,
            grid=(num_par, blocks_per_par),
            in_specs=[
                pl.BlockSpec((rb, _LANES), in_map),
                pl.BlockSpec((rb, _LANES), in_map),
            ],
            # Per-parallel-slice accumulator lives in the output block; it stays
            # resident across the "arbitrary" reduction axis.
            out_specs=pl.BlockSpec((None, 8, _LANES), lambda p, j: (p, 0, 0)),
        ),
        compiler_params=pltpu.CompilerParams(
            dimension_semantics=("parallel", "arbitrary")),
    )(logits2d, label2d)

    total_sum = jnp.sum(partial_sums)          # single final cross-lane reduce
    if reduction == "mean":
        return total_sum / jnp.float32(total)
    return total_sum


def _reference(logits, label, alpha=0.25, gamma=2, reduction="mean"):
    """Pure-JAX reference mirroring the PyTorch forward."""
    x = logits.astype(jnp.float32)
    y = label.astype(jnp.float32)
    is_pos = label == 1
    alpha_t = jnp.where(is_pos, alpha, 1.0 - alpha)
    probs = jax.nn.sigmoid(x)
    pt = jnp.where(is_pos, probs, 1.0 - probs)
    ce = jnp.maximum(x, 0.0) - x * y + jnp.log1p(jnp.exp(-jnp.abs(x)))
    loss = alpha_t * jnp.power(1.0 - pt, gamma) * ce
    if reduction == "mean":
        return jnp.mean(loss)
    return jnp.sum(loss)


if __name__ == "__main__":
    key = jax.random.PRNGKey(0)
    k_logits, k_label = jax.random.split(key)

    # layout: NCHW, as in the PyTorch module (N=2, C=4, H=16, W=16)
    shape = (2, 4, 16, 16)
    logits = jax.random.normal(k_logits, shape, dtype=jnp.float32) * 2.0
    label = jax.random.bernoulli(k_label, p=0.3, shape=shape).astype(jnp.float32)

    loss = focal_loss_v1(logits, label, alpha=0.25, gamma=2, reduction="mean")
    loss = jax.block_until_ready(loss)
    ref = _reference(logits, label, alpha=0.25, gamma=2, reduction="mean")
    assert jnp.allclose(loss, ref, rtol=1e-3, atol=1e-6), (loss, ref)

    # Ragged shape (not a multiple of 128) exercising the padded-tail path.
    shape2 = (2, 3, 7, 5)
    logits2 = jax.random.normal(k_logits, shape2, dtype=jnp.float32) * 3.0
    label2 = jax.random.bernoulli(k_label, p=0.5, shape=shape2).astype(jnp.float32)
    loss2 = jax.block_until_ready(
        focal_loss_v1(logits2, label2, alpha=0.25, gamma=2, reduction="sum"))
    ref2 = _reference(logits2, label2, alpha=0.25, gamma=2, reduction="sum")
    assert jnp.allclose(loss2, ref2, rtol=1e-3, atol=1e-5), (loss2, ref2)

    print("KERNEL_OK")
</pallas_src>

<mosaic_0001>
module attributes {stable_mosaic.version = 11 : i64} {
  func.func @_focal_kernel(%arg0: i32, %arg1: i32, %arg2: memref<16x128xf32, #tpu.memory_space<vmem>>, %arg3: memref<16x128xf32, #tpu.memory_space<vmem>>, %arg4: memref<1x8x128xf32, #tpu.memory_space<vmem>>) attributes {dimension_semantics = [#tpu.dimension_semantics<parallel>, #tpu.dimension_semantics<arbitrary>], iteration_bounds = array<i64: 1, 1>, scalar_prefetch = 0 : i64, scratch_operands = 0 : i64, tpu.core_type = #tpu.core_type<tc>, window_params = [{transform_indices = @transform_0, window_bounds = array<i64: 16, 128>}, {transform_indices = @transform_1, window_bounds = array<i64: 16, 128>}, {transform_indices = @transform_2, window_bounds = array<i64: 1, 8, 128>}]} {
    %c0_i32 = arith.constant 0 : i32
    %0 = arith.cmpi eq, %arg1, %c0_i32 : i32
    %1 = arith.extui %0 : i1 to i32
    %c0_i32_0 = arith.constant 0 : i32
    %2 = arith.cmpi ne, %1, %c0_i32_0 : i32
    scf.if %2 {
      %cst_19 = arith.constant 0.000000e+00 : f32
      %43 = vector.broadcast %cst_19 : f32 to vector<8x128xf32>
      %c0_20 = arith.constant 0 : index
      %c0_21 = arith.constant 0 : index
      %c0_22 = arith.constant 0 : index
      %44 = vector.load %arg4[%c0_20, %c0_21, %c0_22] : memref<1x8x128xf32, #tpu.memory_space<vmem>>, vector<1x8x128xf32>
      %45 = vector.shape_cast %44 : vector<1x8x128xf32> to vector<8x128xf32>
      %46 = vector.shape_cast %43 : vector<8x128xf32> to vector<1x8x128xf32>
      tpu.vector_store %arg4[%c0_20, %c0_21, %c0_22], %46 {strides = array<i32>} : memref<1x8x128xf32, #tpu.memory_space<vmem>>, vector<1x8x128xf32>,
    } else {
    }
    %c0 = arith.constant 0 : index
    %c0_1 = arith.constant 0 : index
    %3 = vector.load %arg2[%c0, %c0_1] : memref<16x128xf32, #tpu.memory_space<vmem>>, vector<16x128xf32>
    %c0_2 = arith.constant 0 : index
    %c0_3 = arith.constant 0 : index
    %4 = vector.load %arg3[%c0_2, %c0_3] : memref<16x128xf32, #tpu.memory_space<vmem>>, vector<16x128xf32>
    %cst = arith.constant 1.000000e+00 : f32
    %5 = vector.broadcast %cst : f32 to vector<16x128xf32>
    %6 = arith.cmpf oeq, %4, %5 : vector<16x128xf32>
    %7 = math.absf %3 : vector<16x128xf32>
    %cst_4 = arith.constant 0.000000e+00 : f32
    %8 = vector.broadcast %cst_4 : f32 to vector<16x128xf32>
    %9 = arith.subf %8, %7 : vector<16x128xf32>
    %10 = math.exp %9 : vector<16x128xf32>
    %cst_5 = arith.constant 1.000000e+00 : f32
    %11 = vector.broadcast %cst_5 : f32 to vector<16x128xf32>
    %12 = arith.addf %11, %10 : vector<16x128xf32>
    %13 = tpu.reciprocal %12 {approx = true} : vector<16x128xf32> -> vector<16x128xf32>
    %cst_6 = arith.constant 0.000000e+00 : f32
    %14 = vector.broadcast %cst_6 : f32 to vector<16x128xf32>
    %15 = arith.cmpf oge, %3, %14 : vector<16x128xf32>
    %16 = arith.mulf %10, %13 : vector<16x128xf32>
    %17 = arith.select %15, %13, %16 : vector<16x128xi1>, vector<16x128xf32>
    %cst_7 = arith.constant 1.000000e+00 : f32
    %18 = vector.broadcast %cst_7 : f32 to vector<16x128xf32>
    %19 = arith.subf %18, %17 : vector<16x128xf32>
    %20 = arith.select %6, %17, %19 : vector<16x128xi1>, vector<16x128xf32>
    %cst_8 = arith.constant 2.500000e-01 : f32
    %cst_9 = arith.constant 7.500000e-01 : f32
    %21 = vector.broadcast %cst_8 : f32 to vector<16x128xf32>
    %22 = vector.broadcast %cst_9 : f32 to vector<16x128xf32>
    %23 = arith.select %6, %21, %22 : vector<16x128xi1>, vector<16x128xf32>
    %cst_10 = arith.constant 0.000000e+00 : f32
    %24 = vector.broadcast %cst_10 : f32 to vector<16x128xf32>
    %25 = arith.maximumf %3, %24 : vector<16x128xf32>
    %26 = arith.mulf %3, %4 : vector<16x128xf32>
    %27 = arith.subf %25, %26 : vector<16x128xf32>
    %28 = math.log1p %10 : vector<16x128xf32>
    %29 = arith.addf %27, %28 : vector<16x128xf32>
    %cst_11 = arith.constant 1.000000e+00 : f32
    %30 = vector.broadcast %cst_11 : f32 to vector<16x128xf32>
    %31 = arith.subf %30, %20 : vector<16x128xf32>
    %32 = arith.mulf %31, %31 : vector<16x128xf32>
    %33 = arith.mulf %23, %32 : vector<16x128xf32>
    %34 = arith.mulf %33, %29 : vector<16x128xf32>
    %c0_12 = arith.constant 0 : index
    %c0_13 = arith.constant 0 : index
    %c0_14 = arith.constant 0 : index
    %35 = vector.load %arg4[%c0_12, %c0_13, %c0_14] : memref<1x8x128xf32, #tpu.memory_space<vmem>>, vector<1x8x128xf32>
    %36 = vector.shape_cast %35 : vector<1x8x128xf32> to vector<8x128xf32>
    %37 = vector.shape_cast %34 : vector<16x128xf32> to vector<2x8x128xf32>
    %cst_15 = arith.constant dense<0.000000e+00> : vector<8x128xf32>
    %38 = vector.multi_reduction <add>, %37, %cst_15 [0] : vector<2x8x128xf32> to vector<8x128xf32>
    %39 = arith.addf %36, %38 : vector<8x128xf32>
    %c0_16 = arith.constant 0 : index
    %c0_17 = arith.constant 0 : index
    %c0_18 = arith.constant 0 : index
    %40 = vector.load %arg4[%c0_16, %c0_17, %c0_18] : memref<1x8x128xf32, #tpu.memory_space<vmem>>, vector<1x8x128xf32>
    %41 = vector.shape_cast %40 : vector<1x8x128xf32> to vector<8x128xf32>
    %42 = vector.shape_cast %39 : vector<8x128xf32> to vector<1x8x128xf32>
    tpu.vector_store %arg4[%c0_16, %c0_17, %c0_18], %42 {strides = array<i32>} : memref<1x8x128xf32, #tpu.memory_space<vmem>>, vector<1x8x128xf32>,
    return
  }
  func.func @transform_0(%arg0: i32, %arg1: i32) -> (i32, i32) {
    %c1_i32 = arith.constant 1 : i32
    %0 = arith.muli %arg0, %c1_i32 : i32
    %1 = arith.addi %0, %arg1 : i32
    %c0_i32 = arith.constant 0 : i32
    %c0_i32_0 = arith.constant 0 : i32
    return %1, %c0_i32 : i32, i32
  }
  func.func @transform_1(%arg0: i32, %arg1: i32) -> (i32, i32) {
    %c1_i32 = arith.constant 1 : i32
    %0 = arith.muli %arg0, %c1_i32 : i32
    %1 = arith.addi %0, %arg1 : i32
    %c0_i32 = arith.constant 0 : i32
    %c0_i32_0 = arith.constant 0 : i32
    return %1, %c0_i32 : i32, i32
  }
  func.func @transform_2(%arg0: i32, %arg1: i32) -> (i32, i32, i32) {
    %c0_i32 = arith.constant 0 : i32
    %c0_i32_0 = arith.constant 0 : i32
    %c0_i32_1 = arith.constant 0 : i32
    return %arg0, %c0_i32, %c0_i32_0 : i32, i32, i32
  }
}

</mosaic_0001>

<llo_original>
// kernel: tpu_custom_call.1
$region0: #{tpu_custom_call.1}
  #allocation0 [shape = 'u32[]', space=smem, size = 0x4, offset = 0x4, fixed_abs, tag = 'smem constant byte address 0x4 - core index']
  #allocation1 [shape = 'u32[144,128]{1,0:T(1,128)}', space=vmem, size = 0x12000, scoped, tag = 'internal scratch']
  %s0 = inlined_call_operand.hbm [shape: f32[16,128], index: 0, kind: input, shape index: {}]
  %s1 = inlined_call_operand.hbm [shape: f32[16,128], index: 1, kind: input, shape index: {}]
  %s2 = inlined_call_operand.hbm [shape: f32[1,8,128], index: 2, kind: output, shape index: {}]
  %s3 = sld [smem:[#allocation0]]
  $region30: #{tpu_custom_call.1} parent=0
    _
  %s5 = ssub.s32 1, %s3
  %s6 = scalar_select 0, %s5, %s3
  $region1: #{tpu_custom_call.1} parent=0
    #allocation2 [shape = 'u8[8192]{0}', space=vmem, size = 0x2000, scoped, tag = 'input window, operand 0, single buffered']
    #allocation3 [shape = 's32[1]{0}', space=sflag, size = 0x4, scoped, tag = 'scoped memory for tpu_custom_call.1']
    #allocation4 [shape = 's32[1]{0}', space=sflag, size = 0x4, scoped, tag = 'scoped memory for tpu_custom_call.1']
    #allocation5 [shape = 'u8[8192]{0}', space=vmem, size = 0x2000, scoped, tag = 'input window, operand 1, single buffered']
    #allocation6 [shape = 's32[1]{0}', space=sflag, size = 0x4, scoped, tag = 'scoped memory for tpu_custom_call.1']
    #allocation7 [shape = 'u8[4096]{0}', space=vmem, size = 0x1000, scoped, tag = 'output window, operand 0, single buffered']
    %7 = vsyncpa [#allocation3], 0
    %8 = vsyncpa [#allocation6], 0
    %9 = vsyncpa [#allocation4], 0
    // Predicated region
    $region2: #{tpu_custom_call.1} parent=1 // pred_check
      _
    $region3: #{tpu_custom_call.1} parent=1 // pred_check_branch
      %11 = sbr.rel (0) target = $region5
    $region4: #{tpu_custom_call.1} parent=1 // pred_region
      %s12 = sadd.s32 0, 0
      %s13 = smul.u32 2, %s12
      %s15 = ssub.s32 256, 256
      %16 = vsyncadd [#allocation3], %s15
      %s17 = smul.addr %s13, 128
      %s18 = scalar_lea.hbm %s0, %s17
      %s19 = sshll.u32 [#allocation2], 4
      %s20 = int_to_ptr.vmem [resolvable:$true] %s19
      %25 = dma.hbm_to_vmem [thread:$0]  %s18, 256, %s20, [#allocation3], 128, 128, 8
    $region5: #{tpu_custom_call.1} parent=1 // pred_fallthru
      _
    // Predicated region
    $region6: #{tpu_custom_call.1} parent=1 // pred_check
      _
    $region7: #{tpu_custom_call.1} parent=1 // pred_check_branch
      %27 = sbr.rel (0) target = $region9
    $region8: #{tpu_custom_call.1} parent=1 // pred_region
      %s28 = sadd.s32 0, 0
      %s29 = smul.u32 2, %s28
      %s31 = ssub.s32 256, 256
      %32 = vsyncadd [#allocation6], %s31
      %s33 = smul.addr %s29, 128
      %s34 = scalar_lea.hbm %s1, %s33
      %s35 = sshll.u32 [#allocation5], 4
      %s36 = int_to_ptr.vmem [resolvable:$true] %s35
      %41 = dma.hbm_to_vmem [thread:$0]  %s34, 256, %s36, [#allocation6], 128, 128, 8
    $region9: #{tpu_custom_call.1} parent=1 // pred_fallthru
      _
    // Predicated region
    $region10: #{tpu_custom_call.1} parent=1 // pred_check
      _
    $region11: #{tpu_custom_call.1} parent=1 // pred_check_branch
      %43 = sbr.rel (0) target = $region13
    $region12: #{tpu_custom_call.1} parent=1 // pred_region
      %44 = dma.done [#allocation3], 256
    $region13: #{tpu_custom_call.1} parent=1 // pred_fallthru
      _
    // Predicated region
    $region14: #{tpu_custom_call.1} parent=1 // pred_check
      _
    $region15: #{tpu_custom_call.1} parent=1 // pred_check_branch
      %46 = sbr.rel (0) target = $region17
    $region16: #{tpu_custom_call.1} parent=1 // pred_region
      %47 = dma.done [#allocation6], 256
    $region17: #{tpu_custom_call.1} parent=1 // pred_fallthru
      _
    %s48 = sadd.s32 0, 0
    %s49 = smul.u32 2, %s48
    %s50 = sadd.s32 0, 0
    %s51 = smul.u32 2, %s50
    %p52 = scmp.eq.s32.totalorder 0, 0
    // Predicated region
    $region18: #{tpu_custom_call.1} parent=1 // pred_check
      %p53 = pneg %p52
    $region19: #{tpu_custom_call.1} parent=1 // pred_check_branch
      %55 = sbr.rel (%p53) target = $region21
    $region20: #{tpu_custom_call.1} parent=1 // pred_region
      %56 = vst [vmem:[#allocation7] sm:$0xff] 0.0
    $region21: #{tpu_custom_call.1} parent=1 // pred_fallthru
      _
    %v57 = vld [vmem:[#allocation2] sm:$0xff]
    %v58 = vld [vmem:[#allocation2 + $0x8] sm:$0xff]
    %v59 = vld [vmem:[#allocation5] sm:$0xff]
    %v60 = vld [vmem:[#allocation5 + $0x8] sm:$0xff]
    %vm61 = vcmp.eq.f32.partialorder %v59, 1.0
    %vm62 = vcmp.eq.f32.partialorder %v60, 1.0
    %v63 = vand.u32 2147483647, %v57
    %v64 = vand.u32 2147483647, %v58
    %v65 = vsub.f32 0.0, %v63
    %v66 = vsub.f32 0.0, %v64
    %v67 = vmul.f32 %v65, 1.442695
    %v68 = vpow.pop %v67
    %v69 = vmul.f32 %v66, 1.442695
    %v70 = vpow.pop %v69
    %v71 = vadd.f32 %v68, 1.0
    %v72 = vadd.f32 %v70, 1.0
    %v73 = vrcp.pop %v71
    %v74 = vrcp.pop %v72
    %vm75 = vcmp.ge.f32.partialorder %v57, 0.0
    %vm76 = vcmp.ge.f32.partialorder %v58, 0.0
    %v77 = vmul.f32 %v68, %v73
    %v78 = vmul.f32 %v70, %v74
    %v79 = vsel %vm75, %v73, %v77
    %v80 = vsel %vm76, %v74, %v78
    %v81 = vsub.f32 1.0, %v79
    %v82 = vsub.f32 1.0, %v80
    %v83 = vsel %vm61, %v79, %v81
    %v84 = vsel %vm62, %v80, %v82
    %v85 = vsel %vm61, 0.25, 0.75
    %v86 = vsel %vm62, 0.25, 0.75
    %v87 = vmax.f32 %v57, 0.0
    %v88 = vmax.f32 %v58, 0.0
    %v89 = vmul.f32 %v57, %v59
    %v90 = vmul.f32 %v58, %v60
    %v91 = vsub.f32 %v87, %v89
    %v92 = vsub.f32 %v88, %v90
    %v93 = vadd.f32 %v68, 1.0
    %v94 = vlog2.pop %v93
    %v95 = vmul.f32 %v94, 0.6931472
    %v96 = vmul.f32 -0.5, %v68
    %v97 = vadd.f32 %v96, 1.0
    %v98 = vmul.f32 %v97, %v68
    %v99 = vand.u32 2147483647, %v68
    %vm100 = vcmp.lt.f32.partialorder %v99, 0.0004427343
    %v101 = vsel %vm100, %v98, %v95
    %v102 = vadd.f32 %v70, 1.0
    %v103 = vlog2.pop %v102
    %v104 = vmul.f32 %v103, 0.6931472
    %v105 = vmul.f32 -0.5, %v70
    %v106 = vadd.f32 %v105, 1.0
    %v107 = vmul.f32 %v106, %v70
    %v108 = vand.u32 2147483647, %v70
    %vm109 = vcmp.lt.f32.partialorder %v108, 0.0004427343
    %v110 = vsel %vm109, %v107, %v104
    %v111 = vadd.f32 %v91, %v101
    %v112 = vadd.f32 %v92, %v110
    %v113 = vsub.f32 1.0, %v83
    %v114 = vsub.f32 1.0, %v84
    %v115 = vmul.f32 %v113, %v113
    %v116 = vmul.f32 %v114, %v114
    %v117 = vmul.f32 %v85, %v115
    %v118 = vmul.f32 %v86, %v116
    %v119 = vmul.f32 %v117, %v111
    %v120 = vmul.f32 %v118, %v112
    %v121 = vld [vmem:[#allocation7] sm:$0xff]
    %v122 = vadd.f32 %v119, %v120
    %v123 = vadd.f32 %v121, %v122
    %124 = vst [vmem:[#allocation7] sm:$0xff] %v123
    // Predicated region
    $region22: #{tpu_custom_call.1} parent=1 // pred_check
      _
    $region23: #{tpu_custom_call.1} parent=1 // pred_check_branch
      %126 = sbr.rel (0) target = $region25
    $region24: #{tpu_custom_call.1} parent=1 // pred_region
      %s128 = ssub.s32 128, 128
      %129 = vsyncadd [#allocation4], %s128
      %s131 = sshll.u32 [#allocation7], 4
      %s132 = int_to_ptr.vmem [resolvable:$true] %s131
      %134 = dma.vmem_to_hbm [thread:$0]  %s132, 128, %s2, [#allocation4]
    $region25: #{tpu_custom_call.1} parent=1 // pred_fallthru
      _
    // Predicated region
    $region26: #{tpu_custom_call.1} parent=1 // pred_check
      _
    $region27: #{tpu_custom_call.1} parent=1 // pred_check_branch
      %136 = sbr.rel (0) target = $region29
    $region28: #{tpu_custom_call.1} parent=1 // pred_region
      %137 = dma.done [#allocation4], 128
    $region29: #{tpu_custom_call.1} parent=1 // pred_fallthru
      _
    %138 = vsyncpa [#allocation3], 1
    %139 = vsyncpa [#allocation6], 1
    %140 = vsyncpa [#allocation4], 1

</llo_original>
